<compile_context>
chip_gen: v5e
topology: v5e:2x2
jax: 0.10.0
libtpu: 0.0.40
codegen_flags: <defaults>
</compile_context>

<pallas_src>
import functools

import jax
import jax.numpy as jnp
from jax.experimental import pallas as pl
from jax.experimental.pallas import tpu as pltpu

LANES = 128
SUBLANES = 8
TARGET_BLOCK_BYTES = 1 << 20  # ~1 MiB per input per block (2048 f32 / 4096 bf16 rows)


def _round_up(x, m):
    return (x + m - 1) // m * m


def _num_tensorcores():
    """2 on v7x (2 TensorCores/chip), 1 on v5e/v6e and anything unknown."""
    try:
        kind = jax.devices()[0].device_kind.lower()
    except Exception:
        return 1
    return 2 if ("v7" in kind or "7x" in kind) else 1


def _mse_kernel(es_ref, ta_ref, out_ref, *, rows, block_rows, blocks_per_core):
    c = pl.program_id(0)            # core / parallel axis
    i = pl.program_id(1)            # streaming reduction axis

    # Zero this core's resident (1, 8, 128) output accumulator on its first step.
    @pl.when(i == 0)
    def _():
        out_ref[...] = jnp.zeros_like(out_ref)

    # Native-dtype loads; cast to f32 in-register (v5e VPU has no bf16 math).
    d = es_ref[...].astype(jnp.float32) - ta_ref[...].astype(jnp.float32)
    sq = d * d

    # blocks_per_core is passed statically and matches the index_map's layout.
    blk = c * blocks_per_core + i
    is_full = (blk + 1) * block_rows <= rows

    # Fast path (all interior blocks): plain sublane-aligned VPU accumulate —
    # no iota, no compare, no select in the steady state.
    @pl.when(is_full)
    def _():
        part = jnp.sum(sq.reshape(-1, SUBLANES, LANES), axis=0)
        out_ref[...] += part[None]

    # Slow path (at most one ragged block per core, plus fully-masked clamped
    # duplicates): drop rows past the true extent with a NaN-safe select.
    @pl.when(jnp.logical_not(is_full))
    def _():
        row_ids = blk * block_rows + jax.lax.broadcasted_iota(jnp.int32, sq.shape, 0)
        masked = jnp.where(row_ids < rows, sq, 0.0)
        part = jnp.sum(masked.reshape(-1, SUBLANES, LANES), axis=0)
        out_ref[...] += part[None]


def l2_loss(es, ta):
    """Pallas equivalent of F.mse_loss(es, ta) (mean reduction). Returns [scalar]."""
    assert es.shape == ta.shape, "mse_loss with equal shapes (no broadcasting) expected"
    n = es.size

    es_f = es.reshape(-1)
    ta_f = ta.reshape(-1)

    if n % LANES != 0:
        # Edge case only: pad to lane-dense (multiple of 128). Padded elements
        # land in the masked ragged tail and contribute 0. Most real shapes
        # (n % 128 == 0) take the copy-free path.
        pad = LANES - n % LANES
        es_f = jnp.pad(es_f, (0, pad))
        ta_f = jnp.pad(ta_f, (0, pad))

    rows = es_f.size // LANES
    es2d = es_f.reshape(rows, LANES)     # free reshape: no data movement
    ta2d = ta_f.reshape(rows, LANES)

    # Block size: ~1 MiB per input in native dtype; always a multiple of 8
    # rows (rounding rows up here lets the in-kernel mask absorb ragged rows).
    itembytes = max(jnp.dtype(es.dtype).itemsize, jnp.dtype(ta.dtype).itemsize)
    max_block_rows = max(
        SUBLANES, (TARGET_BLOCK_BYTES // (LANES * itembytes)) // SUBLANES * SUBLANES
    )
    block_rows = min(max_block_rows, _round_up(rows, SUBLANES))

    total_blocks = pl.cdiv(rows, block_rows)
    num_cores = min(_num_tensorcores(), total_blocks)   # never more cores than blocks
    blocks_per_core = pl.cdiv(total_blocks, num_cores)

    def _in_map(c, i):
        blk = c * blocks_per_core + i
        # Clamp so no DMA ever goes out of bounds; duplicated blocks (only
        # possible on v7x when total_blocks is odd) are zeroed by the mask.
        return (jnp.minimum(blk, total_blocks - 1), 0)

    kernel = functools.partial(
        _mse_kernel, rows=rows, block_rows=block_rows, blocks_per_core=blocks_per_core
    )

    cost = pl.CostEstimate(
        flops=3 * n,               # sub, mul, add per element
        transcendentals=0,
        bytes_accessed=(
            es2d.size * jnp.dtype(es.dtype).itemsize
            + ta2d.size * jnp.dtype(ta.dtype).itemsize
            + num_cores * SUBLANES * LANES * 4
        ),
    )

    partials = pl.pallas_call(
        kernel,
        out_shape=jax.ShapeDtypeStruct((num_cores, SUBLANES, LANES), jnp.float32),
        grid_spec=pltpu.PrefetchScalarGridSpec(
            num_scalar_prefetch=0,
            grid=(num_cores, blocks_per_core),
            in_specs=[
                pl.BlockSpec((block_rows, LANES), _in_map),
                pl.BlockSpec((block_rows, LANES), _in_map),
            ],
            # Lane-dense per-core partial; resident across the reduction axis.
            out_specs=pl.BlockSpec((1, SUBLANES, LANES), lambda c, i: (c, 0, 0)),
        ),
        compiler_params=pltpu.CompilerParams(
            dimension_semantics=("parallel", "arbitrary"),
        ),
        cost_estimate=cost,
    )(es2d, ta2d)

    # Tiny final reduce (<= 2 x 1024 floats) + mean over the true element count.
    loss = jnp.sum(partials) * jnp.float32(1.0 / n)
    # Module returns a list with a single scalar loss.
    return [loss]


if __name__ == "__main__":
    key = jax.random.PRNGKey(0)
    k1, k2 = jax.random.split(key)
    # Small shapes consistent with a generic loss input (NCHW-like tensor).
    es = jax.random.normal(k1, (2, 4, 16, 16), dtype=jnp.float32)
    ta = jax.random.normal(k2, (2, 4, 16, 16), dtype=jnp.float32)

    result = l2_loss(es, ta)
    loss = jax.block_until_ready(result[0])

    ref = jnp.mean((es - ta) ** 2)
    assert jnp.allclose(loss, ref, rtol=1e-5, atol=1e-6), (loss, ref)
    print("KERNEL_OK")
</pallas_src>

<mosaic_0001>
module attributes {stable_mosaic.version = 11 : i64} {
  func.func @_mse_kernel(%arg0: i32, %arg1: i32, %arg2: memref<16x128xf32, #tpu.memory_space<vmem>>, %arg3: memref<16x128xf32, #tpu.memory_space<vmem>>, %arg4: memref<1x8x128xf32, #tpu.memory_space<vmem>>) attributes {dimension_semantics = [#tpu.dimension_semantics<parallel>, #tpu.dimension_semantics<arbitrary>], iteration_bounds = array<i64: 1, 1>, scalar_prefetch = 0 : i64, scratch_operands = 0 : i64, tpu.core_type = #tpu.core_type<tc>, window_params = [{transform_indices = @transform_0, window_bounds = array<i64: 16, 128>}, {transform_indices = @transform_1, window_bounds = array<i64: 16, 128>}, {transform_indices = @transform_2, window_bounds = array<i64: 1, 8, 128>}]} {
    %c0_i32 = arith.constant 0 : i32
    %0 = arith.cmpi eq, %arg1, %c0_i32 : i32
    %1 = arith.extui %0 : i1 to i32
    %c0_i32_0 = arith.constant 0 : i32
    %2 = arith.cmpi ne, %1, %c0_i32_0 : i32
    scf.if %2 {
      %cst = arith.constant 0.000000e+00 : f32
      %17 = vector.broadcast %cst : f32 to vector<1x8x128xf32>
      %c0_8 = arith.constant 0 : index
      %c0_9 = arith.constant 0 : index
      %c0_10 = arith.constant 0 : index
      %18 = vector.load %arg4[%c0_8, %c0_9, %c0_10] : memref<1x8x128xf32, #tpu.memory_space<vmem>>, vector<1x8x128xf32>
      tpu.vector_store %arg4[%c0_8, %c0_9, %c0_10], %17 {strides = array<i32>} : memref<1x8x128xf32, #tpu.memory_space<vmem>>, vector<1x8x128xf32>,
    } else {
    }
    %c0 = arith.constant 0 : index
    %c0_1 = arith.constant 0 : index
    %3 = vector.load %arg2[%c0, %c0_1] : memref<16x128xf32, #tpu.memory_space<vmem>>, vector<16x128xf32>
    %c0_2 = arith.constant 0 : index
    %c0_3 = arith.constant 0 : index
    %4 = vector.load %arg3[%c0_2, %c0_3] : memref<16x128xf32, #tpu.memory_space<vmem>>, vector<16x128xf32>
    %5 = arith.subf %3, %4 : vector<16x128xf32>
    %6 = arith.mulf %5, %5 : vector<16x128xf32>
    %c1_i32 = arith.constant 1 : i32
    %7 = arith.muli %arg0, %c1_i32 : i32
    %8 = arith.addi %7, %arg1 : i32
    %c1_i32_4 = arith.constant 1 : i32
    %9 = arith.addi %8, %c1_i32_4 : i32
    %c16_i32 = arith.constant 16 : i32
    %10 = arith.muli %9, %c16_i32 : i32
    %c16_i32_5 = arith.constant 16 : i32
    %11 = arith.cmpi sle, %10, %c16_i32_5 : i32
    %12 = arith.extui %11 : i1 to i32
    %c0_i32_6 = arith.constant 0 : i32
    %13 = arith.cmpi ne, %12, %c0_i32_6 : i32
    scf.if %13 {
      %17 = vector.shape_cast %6 : vector<16x128xf32> to vector<2x8x128xf32>
      %cst = arith.constant dense<0.000000e+00> : vector<8x128xf32>
      %18 = vector.multi_reduction <add>, %17, %cst [0] : vector<2x8x128xf32> to vector<8x128xf32>
      %c0_8 = arith.constant 0 : index
      %c0_9 = arith.constant 0 : index
      %c0_10 = arith.constant 0 : index
      %19 = vector.load %arg4[%c0_8, %c0_9, %c0_10] : memref<1x8x128xf32, #tpu.memory_space<vmem>>, vector<1x8x128xf32>
      %20 = vector.shape_cast %18 : vector<8x128xf32> to vector<1x8x128xf32>
      %21 = arith.addf %19, %20 : vector<1x8x128xf32>
      %c0_11 = arith.constant 0 : index
      %c0_12 = arith.constant 0 : index
      %c0_13 = arith.constant 0 : index
      %22 = vector.load %arg4[%c0_11, %c0_12, %c0_13] : memref<1x8x128xf32, #tpu.memory_space<vmem>>, vector<1x8x128xf32>
      tpu.vector_store %arg4[%c0_11, %c0_12, %c0_13], %21 {strides = array<i32>} : memref<1x8x128xf32, #tpu.memory_space<vmem>>, vector<1x8x128xf32>,
    } else {
    }
    %true = arith.constant true
    %14 = arith.xori %11, %true : i1
    %15 = arith.extui %14 : i1 to i32
    %c0_i32_7 = arith.constant 0 : i32
    %16 = arith.cmpi ne, %15, %c0_i32_7 : i32
    scf.if %16 {
      %c16_i32_8 = arith.constant 16 : i32
      %17 = arith.muli %8, %c16_i32_8 : i32
      %18 = tpu.iota {dimensions = array<i32: 0>} : vector<16x128xi32>
      %19 = vector.broadcast %17 : i32 to vector<16x128xi32>
      %20 = arith.addi %19, %18 : vector<16x128xi32>
      %c16_i32_9 = arith.constant 16 : i32
      %21 = vector.broadcast %c16_i32_9 : i32 to vector<16x128xi32>
      %22 = arith.cmpi slt, %20, %21 : vector<16x128xi32>
      %cst = arith.constant 0.000000e+00 : f32
      %23 = vector.broadcast %cst : f32 to vector<16x128xf32>
      %24 = arith.select %22, %6, %23 : vector<16x128xi1>, vector<16x128xf32>
      %25 = vector.shape_cast %24 : vector<16x128xf32> to vector<2x8x128xf32>
      %cst_10 = arith.constant dense<0.000000e+00> : vector<8x128xf32>
      %26 = vector.multi_reduction <add>, %25, %cst_10 [0] : vector<2x8x128xf32> to vector<8x128xf32>
      %c0_11 = arith.constant 0 : index
      %c0_12 = arith.constant 0 : index
      %c0_13 = arith.constant 0 : index
      %27 = vector.load %arg4[%c0_11, %c0_12, %c0_13] : memref<1x8x128xf32, #tpu.memory_space<vmem>>, vector<1x8x128xf32>
      %28 = vector.shape_cast %26 : vector<8x128xf32> to vector<1x8x128xf32>
      %29 = arith.addf %27, %28 : vector<1x8x128xf32>
      %c0_14 = arith.constant 0 : index
      %c0_15 = arith.constant 0 : index
      %c0_16 = arith.constant 0 : index
      %30 = vector.load %arg4[%c0_14, %c0_15, %c0_16] : memref<1x8x128xf32, #tpu.memory_space<vmem>>, vector<1x8x128xf32>
      tpu.vector_store %arg4[%c0_14, %c0_15, %c0_16], %29 {strides = array<i32>} : memref<1x8x128xf32, #tpu.memory_space<vmem>>, vector<1x8x128xf32>,
    } else {
    }
    return
  }
  func.func @transform_0(%arg0: i32, %arg1: i32) -> (i32, i32) {
    %c1_i32 = arith.constant 1 : i32
    %0 = arith.muli %arg0, %c1_i32 : i32
    %1 = arith.addi %0, %arg1 : i32
    %c0_i32 = arith.constant 0 : i32
    %2 = arith.minsi %1, %c0_i32 : i32
    %c0_i32_0 = arith.constant 0 : i32
    %c0_i32_1 = arith.constant 0 : i32
    return %2, %c0_i32_0 : i32, i32
  }
  func.func @transform_1(%arg0: i32, %arg1: i32) -> (i32, i32) {
    %c1_i32 = arith.constant 1 : i32
    %0 = arith.muli %arg0, %c1_i32 : i32
    %1 = arith.addi %0, %arg1 : i32
    %c0_i32 = arith.constant 0 : i32
    %2 = arith.minsi %1, %c0_i32 : i32
    %c0_i32_0 = arith.constant 0 : i32
    %c0_i32_1 = arith.constant 0 : i32
    return %2, %c0_i32_0 : i32, i32
  }
  func.func @transform_2(%arg0: i32, %arg1: i32) -> (i32, i32, i32) {
    %c0_i32 = arith.constant 0 : i32
    %c0_i32_0 = arith.constant 0 : i32
    %c0_i32_1 = arith.constant 0 : i32
    return %arg0, %c0_i32, %c0_i32_0 : i32, i32, i32
  }
}

</mosaic_0001>

<llo_original>
// kernel: tpu_custom_call.1
$region0: #{tpu_custom_call.1}
  #allocation0 [shape = 'u32[]', space=smem, size = 0x4, offset = 0x4, fixed_abs, tag = 'smem constant byte address 0x4 - core index']
  #allocation1 [shape = 'u32[72,128]{1,0:T(1,128)}', space=vmem, size = 0x9000, scoped, tag = 'internal scratch']
  %s0 = inlined_call_operand.hbm [shape: f32[16,128], index: 0, kind: input, shape index: {}]
  %s1 = inlined_call_operand.hbm [shape: f32[16,128], index: 1, kind: input, shape index: {}]
  %s2 = inlined_call_operand.hbm [shape: f32[1,8,128], index: 2, kind: output, shape index: {}]
  %s3 = sld [smem:[#allocation0]]
  $region38: #{tpu_custom_call.1} parent=0
    _
  %s5 = ssub.s32 1, %s3
  %s6 = scalar_select 0, %s5, %s3
  $region1: #{tpu_custom_call.1} parent=0
    #allocation2 [shape = 'u8[8192]{0}', space=vmem, size = 0x2000, scoped, tag = 'input window, operand 0, single buffered']
    #allocation3 [shape = 's32[1]{0}', space=sflag, size = 0x4, scoped, tag = 'scoped memory for tpu_custom_call.1']
    #allocation4 [shape = 's32[1]{0}', space=sflag, size = 0x4, scoped, tag = 'scoped memory for tpu_custom_call.1']
    #allocation5 [shape = 'u8[8192]{0}', space=vmem, size = 0x2000, scoped, tag = 'input window, operand 1, single buffered']
    #allocation6 [shape = 's32[1]{0}', space=sflag, size = 0x4, scoped, tag = 'scoped memory for tpu_custom_call.1']
    #allocation7 [shape = 'u8[4096]{0}', space=vmem, size = 0x1000, scoped, tag = 'output window, operand 0, single buffered']
    %7 = vsyncpa [#allocation3], 0
    %8 = vsyncpa [#allocation6], 0
    %9 = vsyncpa [#allocation4], 0
    // Predicated region
    $region2: #{tpu_custom_call.1} parent=1 // pred_check
      _
    $region3: #{tpu_custom_call.1} parent=1 // pred_check_branch
      %11 = sbr.rel (0) target = $region5
    $region4: #{tpu_custom_call.1} parent=1 // pred_region
      %s12 = sadd.s32 0, 0
      %p13 = scmp.lt.s32.totalorder %s12, 0
      %s14 = scalar_select %p13, %s12, 0
      %s15 = smul.u32 2, %s14
      %17 = vsyncadd [#allocation3], 0
      %s18 = smul.addr %s15, 8
      %s19 = scalar_lea.hbm %s0, %s18
      %s20 = sshll.u32 %s19, 4
      %s21 = int_to_ptr.hbm [resolvable:$true] %s20
      %s22 = sshll.u32 [#allocation2], 4
      %s23 = int_to_ptr.vmem [resolvable:$true] %s22
      %28 = dma.hbm_to_vmem [thread:$0]  %s21, 256, %s23, [#allocation3], 128, 128, 8
    $region5: #{tpu_custom_call.1} parent=1 // pred_fallthru
      _
    // Predicated region
    $region6: #{tpu_custom_call.1} parent=1 // pred_check
      _
    $region7: #{tpu_custom_call.1} parent=1 // pred_check_branch
      %30 = sbr.rel (0) target = $region9
    $region8: #{tpu_custom_call.1} parent=1 // pred_region
      %s31 = sadd.s32 0, 0
      %p32 = scmp.lt.s32.totalorder %s31, 0
      %s33 = scalar_select %p32, %s31, 0
      %s34 = smul.u32 2, %s33
      %36 = vsyncadd [#allocation6], 0
      %s37 = smul.addr %s34, 8
      %s38 = scalar_lea.hbm %s1, %s37
      %s39 = sshll.u32 %s38, 4
      %s40 = int_to_ptr.hbm [resolvable:$true] %s39
      %s41 = sshll.u32 [#allocation5], 4
      %s42 = int_to_ptr.vmem [resolvable:$true] %s41
      %47 = dma.hbm_to_vmem [thread:$0]  %s40, 256, %s42, [#allocation6], 128, 128, 8
    $region9: #{tpu_custom_call.1} parent=1 // pred_fallthru
      _
    // Predicated region
    $region10: #{tpu_custom_call.1} parent=1 // pred_check
      _
    $region11: #{tpu_custom_call.1} parent=1 // pred_check_branch
      %49 = sbr.rel (0) target = $region13
    $region12: #{tpu_custom_call.1} parent=1 // pred_region
      %51 = dma.done [#allocation3], 256
    $region13: #{tpu_custom_call.1} parent=1 // pred_fallthru
      _
    // Predicated region
    $region14: #{tpu_custom_call.1} parent=1 // pred_check
      _
    $region15: #{tpu_custom_call.1} parent=1 // pred_check_branch
      %53 = sbr.rel (0) target = $region17
    $region16: #{tpu_custom_call.1} parent=1 // pred_region
      %55 = dma.done [#allocation6], 256
    $region17: #{tpu_custom_call.1} parent=1 // pred_fallthru
      _
    %s56 = sadd.s32 0, 0
    %p57 = scmp.lt.s32.totalorder %s56, 0
    %s58 = scalar_select %p57, %s56, 0
    %s59 = smul.u32 2, %s58
    %s60 = sadd.s32 0, 0
    %p61 = scmp.lt.s32.totalorder %s60, 0
    %s62 = scalar_select %p61, %s60, 0
    %s63 = smul.u32 2, %s62
    %p64 = scmp.eq.s32.totalorder 0, 0
    // Predicated region
    $region18: #{tpu_custom_call.1} parent=1 // pred_check
      %p65 = pneg %p64
    $region19: #{tpu_custom_call.1} parent=1 // pred_check_branch
      %67 = sbr.rel (%p65) target = $region21
    $region20: #{tpu_custom_call.1} parent=1 // pred_region
      %68 = vst [vmem:[#allocation7] sm:$0xff] 0.0
    $region21: #{tpu_custom_call.1} parent=1 // pred_fallthru
      _
    %v69 = vld [vmem:[#allocation2] sm:$0xff]
    %v70 = vld [vmem:[#allocation2 + $0x8] sm:$0xff]
    %v71 = vld [vmem:[#allocation5] sm:$0xff]
    %v72 = vld [vmem:[#allocation5 + $0x8] sm:$0xff]
    %v73 = vsub.f32 %v69, %v71
    %v74 = vsub.f32 %v70, %v72
    %v75 = vmul.f32 %v73, %v73
    %v76 = vmul.f32 %v74, %v74
    %s77 = sadd.s32 0, 0
    %s78 = sadd.s32 %s77, 1
    %s79 = smul.u32 %s78, 16
    %p80 = scmp.le.s32.totalorder %s79, 16
    // Predicated region
    $region22: #{tpu_custom_call.1} parent=1 // pred_check
      %p81 = pneg %p80
    $region23: #{tpu_custom_call.1} parent=1 // pred_check_branch
      %83 = sbr.rel (%p81) target = $region25
    $region24: #{tpu_custom_call.1} parent=1 // pred_region
      %v84 = vadd.f32 %v75, %v76
      %v85 = vld [vmem:[#allocation7] sm:$0xff]
      %v86 = vadd.f32 %v85, %v84
      %87 = vst [vmem:[#allocation7] sm:$0xff] %v86
    $region25: #{tpu_custom_call.1} parent=1 // pred_fallthru
      _
    %p88 = scmp.gt.s32.totalorder %s79, 16
    // Predicated region
    $region26: #{tpu_custom_call.1} parent=1 // pred_check
      %p89 = pneg %p88
    $region27: #{tpu_custom_call.1} parent=1 // pred_check_branch
      %91 = sbr.rel (%p89) target = $region29
    $region28: #{tpu_custom_call.1} parent=1 // pred_region
      %s92 = smul.u32 %s77, 16
      %v93 = vlaneseq
      %v94 = vshrl.u32 %v93, 7
      %v95 = vadd.s32 %v94, 8
      %v96 = vstv %s92
      %v97 = vadd.s32 %v96, %v94
      %v98 = vadd.s32 %v96, %v95
      %vm99 = vcmp.lt.s32.totalorder %v97, 16
      %vm100 = vcmp.lt.s32.totalorder %v98, 16
      %v101 = vsel %vm99, %v75, 0.0
      %v102 = vsel %vm100, %v76, 0.0
      %v103 = vadd.f32 %v101, %v102
      %v104 = vld [vmem:[#allocation7] sm:$0xff]
      %v105 = vadd.f32 %v104, %v103
      %106 = vst [vmem:[#allocation7] sm:$0xff] %v105
    $region29: #{tpu_custom_call.1} parent=1 // pred_fallthru
      _
    // Predicated region
    $region30: #{tpu_custom_call.1} parent=1 // pred_check
      _
    $region31: #{tpu_custom_call.1} parent=1 // pred_check_branch
      %108 = sbr.rel (0) target = $region33
    $region32: #{tpu_custom_call.1} parent=1 // pred_region
      %110 = vsyncadd [#allocation4], 0
      %s112 = sshll.u32 [#allocation7], 4
      %s113 = int_to_ptr.vmem [resolvable:$true] %s112
      %s114 = sshll.u32 %s2, 4
      %s115 = int_to_ptr.hbm [resolvable:$true] %s114
      %117 = dma.vmem_to_hbm [thread:$0]  %s113, 128, %s115, [#allocation4]
    $region33: #{tpu_custom_call.1} parent=1 // pred_fallthru
      _
    // Predicated region
    $region34: #{tpu_custom_call.1} parent=1 // pred_check
      _
    $region35: #{tpu_custom_call.1} parent=1 // pred_check_branch
      %119 = sbr.rel (0) target = $region37
    $region36: #{tpu_custom_call.1} parent=1 // pred_region
      %121 = dma.done [#allocation4], 128
    $region37: #{tpu_custom_call.1} parent=1 // pred_fallthru
      _
    %122 = vsyncpa [#allocation3], 1
    %123 = vsyncpa [#allocation6], 1
    %124 = vsyncpa [#allocation4], 1

</llo_original>
